<compile_context>
chip_gen: v5e
topology: v5e:2x2
jax: 0.10.0
libtpu: 0.0.40
codegen_flags: <defaults>
</compile_context>

<pallas_src>
import jax
import jax.numpy as jnp
import numpy as np
from jax.experimental import pallas as pl
from jax.experimental.pallas import tpu as pltpu


def basic_block_kernel(x_ref, w1_ref, w2_ref, s1_ref, b1_ref, s2_ref, b2_ref,
                       out_ref, pad_buf):
    """One grid step == one batch image.

    x_ref   : (1, H, W*C)       lane-dense input row-vectors (also residual)
    w*_ref  : (3, W*C, W*C)     bf16 band weight matrices (one per ky tap)
    s*/b*   : (1, W*C)          folded BN scale / bias, tiled over W
    out_ref : (1, H, W*C)
    pad_buf : VMEM (H+2, W*C)   H-padded staging buffer (rows 0, H+1 are zero)
    """
    H = out_ref.shape[1]
    WC = out_ref.shape[2]

    # Zero only the two H-halo rows (W-halo is baked into the band matrices).
    # Done unconditionally every step: 2 rows x 128 lanes is negligible and it
    # stays correct when the grid is sharded across TensorCores.
    zero_row = jnp.zeros((1, WC), dtype=jnp.float32)
    pad_buf[0:1, :] = zero_row
    pad_buf[H + 1:H + 2, :] = zero_row

    x = x_ref[0]                                     # (H, WC) f32; single HBM read

    def conv3x3(w_ref):
        acc = jnp.zeros((H, WC), dtype=jnp.float32)
        for dy in range(3):                          # unrolled: 3 lane-dense matmuls
            lhs = pad_buf[dy:dy + H, :].astype(jnp.bfloat16)
            acc = acc + jnp.dot(lhs, w_ref[dy],
                                preferred_element_type=jnp.float32)
        return acc

    # ---- conv1 -> bn1 -> relu ----
    pad_buf[1:H + 1, :] = x
    y = conv3x3(w1_ref) * s1_ref[...] + b1_ref[...]
    y = jnp.maximum(y, 0.0)

    # ---- conv2 -> bn2 -> +identity residual -> relu ----
    pad_buf[1:H + 1, :] = y
    z = conv3x3(w2_ref) * s2_ref[...] + b2_ref[...] + x
    out_ref[0] = jnp.maximum(z, 0.0).astype(out_ref.dtype)   # one full-tile store


def _band_weights(w, width):
    """(3,3,Cin,Cout) HWIO conv weight -> (3, W*Cin, W*Cout) band matrices.

    band[dy][wi*C + ci, wo*C + co] = w[dy, dx, ci, co] with wi = wo + dx - 1,
    so  x_row[h] (W*C,) @ band[dy]  is the ky=dy tap contribution of input row
    h to every output position of a row.  Out-of-range wi blocks are simply
    absent, which reproduces the zero padding along W.
    """
    return jnp.stack([
        sum(jnp.kron(jnp.eye(width, k=1 - dx, dtype=w.dtype), w[dy, dx])
            for dx in range(3))
        for dy in range(3)
    ])


def basic_block(x, w1, w2, s1, b1, s2, b2):
    """x: (N, H, W, C) f32 NHWC; w*: (3,3,C,C) HWIO; s*/b*: (C,) folded BN."""
    N, H, W, C = x.shape
    WC = W * C

    x2 = x.reshape(N, H, WC)                              # contiguous, free reshape
    wb1 = _band_weights(w1, W).astype(jnp.bfloat16)       # (3, WC, WC)
    wb2 = _band_weights(w2, W).astype(jnp.bfloat16)
    s1t = jnp.tile(s1, W).reshape(1, WC)
    b1t = jnp.tile(b1, W).reshape(1, WC)
    s2t = jnp.tile(s2, W).reshape(1, WC)
    b2t = jnp.tile(b2, W).reshape(1, WC)

    grid_spec = pltpu.PrefetchScalarGridSpec(
        num_scalar_prefetch=0,
        grid=(N,),                                        # 1 image / step; N>=2 keeps
                                                          # both v7x TensorCores busy
        in_specs=[
            pl.BlockSpec((1, H, WC),  lambda n: (n, 0, 0)),   # x (also residual)
            pl.BlockSpec((3, WC, WC), lambda n: (0, 0, 0)),   # band weights conv1
            pl.BlockSpec((3, WC, WC), lambda n: (0, 0, 0)),   # band weights conv2
            pl.BlockSpec((1, WC),     lambda n: (0, 0)),      # s1
            pl.BlockSpec((1, WC),     lambda n: (0, 0)),      # b1
            pl.BlockSpec((1, WC),     lambda n: (0, 0)),      # s2
            pl.BlockSpec((1, WC),     lambda n: (0, 0)),      # b2
        ],
        out_specs=pl.BlockSpec((1, H, WC), lambda n: (n, 0, 0)),
        scratch_shapes=[pltpu.VMEM((H + 2, WC), jnp.float32)],
    )

    out = pl.pallas_call(
        basic_block_kernel,
        out_shape=jax.ShapeDtypeStruct((N, H, WC), x.dtype),
        grid_spec=grid_spec,
        compiler_params=pltpu.CompilerParams(
            dimension_semantics=("parallel",)),
    )(x2, wb1, wb2, s1t, b1t, s2t, b2t)
    return out.reshape(N, H, W, C)


def _reference(x, w1, w2, s1, b1, s2, b2):
    """Pure-JAX reference (NHWC, f32) for validation."""
    def conv3x3(inp, w):
        return jax.lax.conv_general_dilated(
            inp, w, window_strides=(1, 1), padding=((1, 1), (1, 1)),
            dimension_numbers=("NHWC", "HWIO", "NHWC"))
    y = conv3x3(x, w1) * s1 + b1
    y = jnp.maximum(y, 0.0)
    z = conv3x3(y, w2) * s2 + b2
    z = z + x
    return jnp.maximum(z, 0.0)


if __name__ == "__main__":
    N, H, W, C = 2, 16, 16, 8   # inplanes == planes == 8, stride=1, downsample=None

    key = jax.random.PRNGKey(0)
    k1, k2, k3, k4, k5, k6, k7, k8 = jax.random.split(key, 8)

    x = jax.random.normal(k1, (N, H, W, C), dtype=jnp.float32)

    # Conv weights in HWIO layout (PyTorch OIHW transposed), kaiming-ish scale.
    w1 = jax.random.normal(k2, (3, 3, C, C), dtype=jnp.float32) * (1.0 / np.sqrt(9 * C))
    w2 = jax.random.normal(k3, (3, 3, C, C), dtype=jnp.float32) * (1.0 / np.sqrt(9 * C))

    # BatchNorm (inference) parameters, folded to per-channel scale/bias.
    eps = 1e-5
    gamma1 = 1.0 + 0.1 * jax.random.normal(k4, (C,), dtype=jnp.float32)
    beta1 = 0.1 * jax.random.normal(k5, (C,), dtype=jnp.float32)
    mean1 = 0.05 * jax.random.normal(k6, (C,), dtype=jnp.float32)
    var1 = jnp.abs(1.0 + 0.1 * jax.random.normal(k7, (C,), dtype=jnp.float32))
    gamma2 = 1.0 + 0.1 * jax.random.normal(k8, (C,), dtype=jnp.float32)
    beta2 = 0.05 * jnp.arange(C, dtype=jnp.float32) - 0.1
    mean2 = 0.02 * jnp.arange(C, dtype=jnp.float32)
    var2 = 1.0 + 0.05 * jnp.arange(C, dtype=jnp.float32)

    s1 = gamma1 / jnp.sqrt(var1 + eps)
    b1 = beta1 - mean1 * s1
    s2 = gamma2 / jnp.sqrt(var2 + eps)
    b2 = beta2 - mean2 * s2

    out = basic_block(x, w1, w2, s1, b1, s2, b2)
    out = jax.block_until_ready(out)

    ref = _reference(x, w1, w2, s1, b1, s2, b2)
    assert out.shape == (N, H, W, C)
    # Tolerance loosened vs. the pure-f32 version: matmul operands are bf16
    # (f32 accumulation), per the performance review.
    np.testing.assert_allclose(np.asarray(out), np.asarray(ref),
                               rtol=2e-2, atol=2e-2)
    print("KERNEL_OK")
</pallas_src>

<mosaic_0001>
module attributes {stable_mosaic.version = 11 : i64} {
  func.func @basic_block_kernel(%arg0: i32, %arg1: memref<1x16x128xf32, #tpu.memory_space<vmem>>, %arg2: memref<3x128x128xbf16, #tpu.memory_space<vmem>>, %arg3: memref<3x128x128xbf16, #tpu.memory_space<vmem>>, %arg4: memref<1x128xf32, #tpu.memory_space<vmem>>, %arg5: memref<1x128xf32, #tpu.memory_space<vmem>>, %arg6: memref<1x128xf32, #tpu.memory_space<vmem>>, %arg7: memref<1x128xf32, #tpu.memory_space<vmem>>, %arg8: memref<1x16x128xf32, #tpu.memory_space<vmem>>, %arg9: memref<18x128xf32, #tpu.memory_space<vmem>>) attributes {dimension_semantics = [#tpu.dimension_semantics<parallel>], iteration_bounds = array<i64: 2>, scalar_prefetch = 0 : i64, scratch_operands = 1 : i64, tpu.core_type = #tpu.core_type<tc>, window_params = [{transform_indices = @transform_0, window_bounds = array<i64: 1, 16, 128>}, {pipeline_mode = #tpu.pipeline_mode<synchronous>, transform_indices = @transform_1, window_bounds = array<i64: 3, 128, 128>}, {pipeline_mode = #tpu.pipeline_mode<synchronous>, transform_indices = @transform_2, window_bounds = array<i64: 3, 128, 128>}, {pipeline_mode = #tpu.pipeline_mode<synchronous>, transform_indices = @transform_3, window_bounds = array<i64: 1, 128>}, {pipeline_mode = #tpu.pipeline_mode<synchronous>, transform_indices = @transform_4, window_bounds = array<i64: 1, 128>}, {pipeline_mode = #tpu.pipeline_mode<synchronous>, transform_indices = @transform_5, window_bounds = array<i64: 1, 128>}, {pipeline_mode = #tpu.pipeline_mode<synchronous>, transform_indices = @transform_6, window_bounds = array<i64: 1, 128>}, {transform_indices = @transform_7, window_bounds = array<i64: 1, 16, 128>}]} {
    %cst = arith.constant 0.000000e+00 : f32
    %0 = vector.broadcast %cst : f32 to vector<1x128xf32>
    %c0 = arith.constant 0 : index
    %c0_0 = arith.constant 0 : index
    %1 = vector.load %arg9[%c0, %c0_0] : memref<18x128xf32, #tpu.memory_space<vmem>>, vector<1x128xf32>
    tpu.vector_store %arg9[%c0, %c0_0], %0 {strides = array<i32>} : memref<18x128xf32, #tpu.memory_space<vmem>>, vector<1x128xf32>,
    %c17 = arith.constant 17 : index
    %c0_1 = arith.constant 0 : index
    %2 = vector.load %arg9[%c17, %c0_1] : memref<18x128xf32, #tpu.memory_space<vmem>>, vector<1x128xf32>
    tpu.vector_store %arg9[%c17, %c0_1], %0 {strides = array<i32>} : memref<18x128xf32, #tpu.memory_space<vmem>>, vector<1x128xf32>,
    %c0_2 = arith.constant 0 : index
    %c0_3 = arith.constant 0 : index
    %c0_4 = arith.constant 0 : index
    %3 = vector.load %arg1[%c0_2, %c0_3, %c0_4] : memref<1x16x128xf32, #tpu.memory_space<vmem>>, vector<1x16x128xf32>
    %4 = vector.shape_cast %3 : vector<1x16x128xf32> to vector<16x128xf32>
    %c1 = arith.constant 1 : index
    %c0_5 = arith.constant 0 : index
    %5 = vector.load %arg9[%c1, %c0_5] : memref<18x128xf32, #tpu.memory_space<vmem>>, vector<16x128xf32>
    tpu.vector_store %arg9[%c1, %c0_5], %4 {strides = array<i32>} : memref<18x128xf32, #tpu.memory_space<vmem>>, vector<16x128xf32>,
    %cst_6 = arith.constant 0.000000e+00 : f32
    %6 = vector.broadcast %cst_6 : f32 to vector<16x128xf32>
    %c0_7 = arith.constant 0 : index
    %c0_8 = arith.constant 0 : index
    %7 = vector.load %arg9[%c0_7, %c0_8] : memref<18x128xf32, #tpu.memory_space<vmem>>, vector<16x128xf32>
    %8 = arith.truncf %7 : vector<16x128xf32> to vector<16x128xbf16>
    %c0_9 = arith.constant 0 : index
    %c0_10 = arith.constant 0 : index
    %c0_11 = arith.constant 0 : index
    %9 = vector.load %arg2[%c0_9, %c0_10, %c0_11] : memref<3x128x128xbf16, #tpu.memory_space<vmem>>, vector<1x128x128xbf16>
    %10 = vector.shape_cast %9 : vector<1x128x128xbf16> to vector<128x128xbf16>
    %cst_12 = arith.constant dense<0.000000e+00> : vector<16x128xf32>
    %11 = tpu.matmul %8, %10, %cst_12 {dimension_numbers = #tpu.dot_dimension_numbers<[1], [0], [0], [1], [0, 0, 1, 1], [], []>} : vector<16x128xbf16>, vector<128x128xbf16>, vector<16x128xf32> -> vector<16x128xf32>
    %12 = arith.addf %6, %11 : vector<16x128xf32>
    %c1_13 = arith.constant 1 : index
    %c0_14 = arith.constant 0 : index
    %13 = vector.load %arg9[%c1_13, %c0_14] : memref<18x128xf32, #tpu.memory_space<vmem>>, vector<16x128xf32>
    %14 = arith.truncf %13 : vector<16x128xf32> to vector<16x128xbf16>
    %c1_15 = arith.constant 1 : index
    %c0_16 = arith.constant 0 : index
    %c0_17 = arith.constant 0 : index
    %15 = vector.load %arg2[%c1_15, %c0_16, %c0_17] : memref<3x128x128xbf16, #tpu.memory_space<vmem>>, vector<1x128x128xbf16>
    %16 = vector.shape_cast %15 : vector<1x128x128xbf16> to vector<128x128xbf16>
    %cst_18 = arith.constant dense<0.000000e+00> : vector<16x128xf32>
    %17 = tpu.matmul %14, %16, %cst_18 {dimension_numbers = #tpu.dot_dimension_numbers<[1], [0], [0], [1], [0, 0, 1, 1], [], []>} : vector<16x128xbf16>, vector<128x128xbf16>, vector<16x128xf32> -> vector<16x128xf32>
    %18 = arith.addf %12, %17 : vector<16x128xf32>
    %c2 = arith.constant 2 : index
    %c0_19 = arith.constant 0 : index
    %19 = vector.load %arg9[%c2, %c0_19] : memref<18x128xf32, #tpu.memory_space<vmem>>, vector<16x128xf32>
    %20 = arith.truncf %19 : vector<16x128xf32> to vector<16x128xbf16>
    %c2_20 = arith.constant 2 : index
    %c0_21 = arith.constant 0 : index
    %c0_22 = arith.constant 0 : index
    %21 = vector.load %arg2[%c2_20, %c0_21, %c0_22] : memref<3x128x128xbf16, #tpu.memory_space<vmem>>, vector<1x128x128xbf16>
    %22 = vector.shape_cast %21 : vector<1x128x128xbf16> to vector<128x128xbf16>
    %cst_23 = arith.constant dense<0.000000e+00> : vector<16x128xf32>
    %23 = tpu.matmul %20, %22, %cst_23 {dimension_numbers = #tpu.dot_dimension_numbers<[1], [0], [0], [1], [0, 0, 1, 1], [], []>} : vector<16x128xbf16>, vector<128x128xbf16>, vector<16x128xf32> -> vector<16x128xf32>
    %24 = arith.addf %18, %23 : vector<16x128xf32>
    %c0_24 = arith.constant 0 : index
    %c0_25 = arith.constant 0 : index
    %25 = vector.load %arg4[%c0_24, %c0_25] : memref<1x128xf32, #tpu.memory_space<vmem>>, vector<1x128xf32>
    %26 = vector.broadcast %25 : vector<1x128xf32> to vector<16x128xf32>
    %27 = arith.mulf %24, %26 : vector<16x128xf32>
    %c0_26 = arith.constant 0 : index
    %c0_27 = arith.constant 0 : index
    %28 = vector.load %arg5[%c0_26, %c0_27] : memref<1x128xf32, #tpu.memory_space<vmem>>, vector<1x128xf32>
    %29 = vector.broadcast %28 : vector<1x128xf32> to vector<16x128xf32>
    %30 = arith.addf %27, %29 : vector<16x128xf32>
    %cst_28 = arith.constant 0.000000e+00 : f32
    %31 = vector.broadcast %cst_28 : f32 to vector<16x128xf32>
    %32 = arith.maximumf %30, %31 : vector<16x128xf32>
    %c1_29 = arith.constant 1 : index
    %c0_30 = arith.constant 0 : index
    %33 = vector.load %arg9[%c1_29, %c0_30] : memref<18x128xf32, #tpu.memory_space<vmem>>, vector<16x128xf32>
    tpu.vector_store %arg9[%c1_29, %c0_30], %32 {strides = array<i32>} : memref<18x128xf32, #tpu.memory_space<vmem>>, vector<16x128xf32>,
    %cst_31 = arith.constant 0.000000e+00 : f32
    %34 = vector.broadcast %cst_31 : f32 to vector<16x128xf32>
    %c0_32 = arith.constant 0 : index
    %c0_33 = arith.constant 0 : index
    %35 = vector.load %arg9[%c0_32, %c0_33] : memref<18x128xf32, #tpu.memory_space<vmem>>, vector<16x128xf32>
    %36 = arith.truncf %35 : vector<16x128xf32> to vector<16x128xbf16>
    %c0_34 = arith.constant 0 : index
    %c0_35 = arith.constant 0 : index
    %c0_36 = arith.constant 0 : index
    %37 = vector.load %arg3[%c0_34, %c0_35, %c0_36] : memref<3x128x128xbf16, #tpu.memory_space<vmem>>, vector<1x128x128xbf16>
    %38 = vector.shape_cast %37 : vector<1x128x128xbf16> to vector<128x128xbf16>
    %cst_37 = arith.constant dense<0.000000e+00> : vector<16x128xf32>
    %39 = tpu.matmul %36, %38, %cst_37 {dimension_numbers = #tpu.dot_dimension_numbers<[1], [0], [0], [1], [0, 0, 1, 1], [], []>} : vector<16x128xbf16>, vector<128x128xbf16>, vector<16x128xf32> -> vector<16x128xf32>
    %40 = arith.addf %34, %39 : vector<16x128xf32>
    %c1_38 = arith.constant 1 : index
    %c0_39 = arith.constant 0 : index
    %41 = vector.load %arg9[%c1_38, %c0_39] : memref<18x128xf32, #tpu.memory_space<vmem>>, vector<16x128xf32>
    %42 = arith.truncf %41 : vector<16x128xf32> to vector<16x128xbf16>
    %c1_40 = arith.constant 1 : index
    %c0_41 = arith.constant 0 : index
    %c0_42 = arith.constant 0 : index
    %43 = vector.load %arg3[%c1_40, %c0_41, %c0_42] : memref<3x128x128xbf16, #tpu.memory_space<vmem>>, vector<1x128x128xbf16>
    %44 = vector.shape_cast %43 : vector<1x128x128xbf16> to vector<128x128xbf16>
    %cst_43 = arith.constant dense<0.000000e+00> : vector<16x128xf32>
    %45 = tpu.matmul %42, %44, %cst_43 {dimension_numbers = #tpu.dot_dimension_numbers<[1], [0], [0], [1], [0, 0, 1, 1], [], []>} : vector<16x128xbf16>, vector<128x128xbf16>, vector<16x128xf32> -> vector<16x128xf32>
    %46 = arith.addf %40, %45 : vector<16x128xf32>
    %c2_44 = arith.constant 2 : index
    %c0_45 = arith.constant 0 : index
    %47 = vector.load %arg9[%c2_44, %c0_45] : memref<18x128xf32, #tpu.memory_space<vmem>>, vector<16x128xf32>
    %48 = arith.truncf %47 : vector<16x128xf32> to vector<16x128xbf16>
    %c2_46 = arith.constant 2 : index
    %c0_47 = arith.constant 0 : index
    %c0_48 = arith.constant 0 : index
    %49 = vector.load %arg3[%c2_46, %c0_47, %c0_48] : memref<3x128x128xbf16, #tpu.memory_space<vmem>>, vector<1x128x128xbf16>
    %50 = vector.shape_cast %49 : vector<1x128x128xbf16> to vector<128x128xbf16>
    %cst_49 = arith.constant dense<0.000000e+00> : vector<16x128xf32>
    %51 = tpu.matmul %48, %50, %cst_49 {dimension_numbers = #tpu.dot_dimension_numbers<[1], [0], [0], [1], [0, 0, 1, 1], [], []>} : vector<16x128xbf16>, vector<128x128xbf16>, vector<16x128xf32> -> vector<16x128xf32>
    %52 = arith.addf %46, %51 : vector<16x128xf32>
    %c0_50 = arith.constant 0 : index
    %c0_51 = arith.constant 0 : index
    %53 = vector.load %arg6[%c0_50, %c0_51] : memref<1x128xf32, #tpu.memory_space<vmem>>, vector<1x128xf32>
    %54 = vector.broadcast %53 : vector<1x128xf32> to vector<16x128xf32>
    %55 = arith.mulf %52, %54 : vector<16x128xf32>
    %c0_52 = arith.constant 0 : index
    %c0_53 = arith.constant 0 : index
    %56 = vector.load %arg7[%c0_52, %c0_53] : memref<1x128xf32, #tpu.memory_space<vmem>>, vector<1x128xf32>
    %57 = vector.broadcast %56 : vector<1x128xf32> to vector<16x128xf32>
    %58 = arith.addf %55, %57 : vector<16x128xf32>
    %59 = arith.addf %58, %4 : vector<16x128xf32>
    %cst_54 = arith.constant 0.000000e+00 : f32
    %60 = vector.broadcast %cst_54 : f32 to vector<16x128xf32>
    %61 = arith.maximumf %59, %60 : vector<16x128xf32>
    %c0_55 = arith.constant 0 : index
    %c0_56 = arith.constant 0 : index
    %c0_57 = arith.constant 0 : index
    %62 = vector.load %arg8[%c0_55, %c0_56, %c0_57] : memref<1x16x128xf32, #tpu.memory_space<vmem>>, vector<1x16x128xf32>
    %63 = vector.shape_cast %62 : vector<1x16x128xf32> to vector<16x128xf32>
    %64 = vector.shape_cast %61 : vector<16x128xf32> to vector<1x16x128xf32>
    tpu.vector_store %arg8[%c0_55, %c0_56, %c0_57], %64 {strides = array<i32>} : memref<1x16x128xf32, #tpu.memory_space<vmem>>, vector<1x16x128xf32>,
    return
  }
  func.func @transform_0(%arg0: i32) -> (i32, i32, i32) {
    %c0_i32 = arith.constant 0 : i32
    %c0_i32_0 = arith.constant 0 : i32
    %c0_i32_1 = arith.constant 0 : i32
    return %arg0, %c0_i32, %c0_i32_0 : i32, i32, i32
  }
  func.func @transform_1(%arg0: i32) -> (i32, i32, i32) {
    %c0_i32 = arith.constant 0 : i32
    %c0_i32_0 = arith.constant 0 : i32
    %c0_i32_1 = arith.constant 0 : i32
    %c0_i32_2 = arith.constant 0 : i32
    return %c0_i32, %c0_i32_0, %c0_i32_1 : i32, i32, i32
  }
  func.func @transform_2(%arg0: i32) -> (i32, i32, i32) {
    %c0_i32 = arith.constant 0 : i32
    %c0_i32_0 = arith.constant 0 : i32
    %c0_i32_1 = arith.constant 0 : i32
    %c0_i32_2 = arith.constant 0 : i32
    return %c0_i32, %c0_i32_0, %c0_i32_1 : i32, i32, i32
  }
  func.func @transform_3(%arg0: i32) -> (i32, i32) {
    %c0_i32 = arith.constant 0 : i32
    %c0_i32_0 = arith.constant 0 : i32
    %c0_i32_1 = arith.constant 0 : i32
    return %c0_i32, %c0_i32_0 : i32, i32
  }
  func.func @transform_4(%arg0: i32) -> (i32, i32) {
    %c0_i32 = arith.constant 0 : i32
    %c0_i32_0 = arith.constant 0 : i32
    %c0_i32_1 = arith.constant 0 : i32
    return %c0_i32, %c0_i32_0 : i32, i32
  }
  func.func @transform_5(%arg0: i32) -> (i32, i32) {
    %c0_i32 = arith.constant 0 : i32
    %c0_i32_0 = arith.constant 0 : i32
    %c0_i32_1 = arith.constant 0 : i32
    return %c0_i32, %c0_i32_0 : i32, i32
  }
  func.func @transform_6(%arg0: i32) -> (i32, i32) {
    %c0_i32 = arith.constant 0 : i32
    %c0_i32_0 = arith.constant 0 : i32
    %c0_i32_1 = arith.constant 0 : i32
    return %c0_i32, %c0_i32_0 : i32, i32
  }
  func.func @transform_7(%arg0: i32) -> (i32, i32, i32) {
    %c0_i32 = arith.constant 0 : i32
    %c0_i32_0 = arith.constant 0 : i32
    %c0_i32_1 = arith.constant 0 : i32
    return %arg0, %c0_i32, %c0_i32_0 : i32, i32, i32
  }
}

</mosaic_0001>

<llo_original>
// kernel: tpu_custom_call.1
$region0: #{tpu_custom_call.1}
  #allocation0 [shape = 'u32[]', space=smem, size = 0x4, offset = 0x4, fixed_abs, tag = 'smem constant byte address 0x4 - core index']
  #allocation1 [shape = 'u32[72,128]{1,0:T(1,128)}', space=vmem, size = 0x9000, scoped, tag = 'internal scratch']
  #allocation2 [shape = 'f32[18,128]{1,0:T(8,128)}', space=vmem, size = 0x3000, scoped, tag = 'scratch operand']
  %s0 = inlined_call_operand.hbm [shape: f32[2,16,128], index: 0, kind: input, shape index: {}]
  %s1 = inlined_call_operand.hbm [shape: bf16[3,128,128], index: 1, kind: input, shape index: {}]
  %s2 = inlined_call_operand.hbm [shape: bf16[3,128,128], index: 2, kind: input, shape index: {}]
  %s3 = inlined_call_operand.vmem [shape: f32[1,128], index: 3, kind: input, shape index: {}]
  %s4 = inlined_call_operand.vmem [shape: f32[1,128], index: 4, kind: input, shape index: {}]
  %s5 = inlined_call_operand.vmem [shape: f32[1,128], index: 5, kind: input, shape index: {}]
  %s6 = inlined_call_operand.vmem [shape: f32[1,128], index: 6, kind: input, shape index: {}]
  %s7 = inlined_call_operand.hbm [shape: f32[2,16,128], index: 7, kind: output, shape index: {}]
  %s8 = sld [smem:[#allocation0]]
  $region73: #{tpu_custom_call.1} parent=0
    _
  %s10 = ssub.s32 1, %s8
  %s11 = scalar_select 0, %s10, %s8
  $region1: #{tpu_custom_call.1} parent=0
    #allocation3 [shape = 'u8[16384]{0}', space=vmem, size = 0x4000, scoped, tag = 'input window, operand 0']
    #allocation4 [shape = 's32[2]{0}', space=sflag, size = 0x8, scoped, tag = 'scoped memory for tpu_custom_call.1']
    #allocation5 [shape = 's32[2]{0}', space=sflag, size = 0x8, scoped, tag = 'scoped memory for tpu_custom_call.1']
    #allocation6 [shape = 'u8[98304]{0}', space=vmem, size = 0x18000, scoped, tag = 'input window, operand 1, single buffered']
    #allocation7 [shape = 's32[1]{0}', space=sflag, size = 0x4, scoped, tag = 'scoped memory for tpu_custom_call.1']
    #allocation8 [shape = 'u8[98304]{0}', space=vmem, size = 0x18000, scoped, tag = 'input window, operand 2, single buffered']
    #allocation9 [shape = 'u8[16384]{0}', space=vmem, size = 0x4000, scoped, tag = 'output window, operand 0']
    %12 = vsyncpa [#allocation4], 0
    %s13 = scalar_lea.sflag [#allocation4], 1
    %14 = vsyncpa %s13, 0
    %15 = vsyncpa [#allocation7], 0
    %16 = vsyncpa [#allocation5], 0
    %s17 = scalar_lea.sflag [#allocation5], 1
    %18 = vsyncpa %s17, 0
    loop: start=0, step=1, limit=4
    $region2: #{tpu_custom_call.1} parent=1 // loop_pre_header
      _
    $region3: #{tpu_custom_call.1} parent=1 // loop_header
      %s20 = sphi 0, %s24
      %p21 = scmp.ge.s32.totalorder %s20, 4
      %s30 = sphi 0, %s32
      %s33 = sphi 0, %s30
      %s34 = sphi 0, %s33
      %s50 = sphi 0, %s34
      %s54 = sphi 0, %s54
      %s56 = sphi 0, %s54
      %s57 = sphi 0, %s56
      %s71 = sphi 0, %s57
      %s75 = sphi 0, %s75
      %s77 = sphi 0, %s75
      %s78 = sphi 0, %s77
      %s92 = sphi 0, %s78
      %s96 = sphi 0, %s96
      %s98 = sphi 0, %s96
      %s99 = sphi 0, %s98
      %s113 = sphi 0, %s99
      %s117 = sphi 0, %s117
      %s119 = sphi 0, %s117
      %s120 = sphi 0, %s119
      %s134 = sphi 0, %s120
      %s138 = sphi 0, %s138
      %s140 = sphi 0, %s138
      %s141 = sphi 0, %s140
      %s155 = sphi 0, %s141
      %s159 = sphi 0, %s159
      %s161 = sphi 0, %s159
      %s162 = sphi 0, %s161
      %s176 = sphi 0, %s162
      %s182 = sphi 0, %s184
      %s185 = sphi 0, %s182
      %s186 = sphi 0, %s185
      %s202 = sphi 0, %s186
    $region4: #{tpu_custom_call.1} parent=1 // loop_header_branch
      %23 = sbr.rel (%p21) target = $region8
    $region5: #{tpu_custom_call.1} parent=1 // loop_body
      %s25 = ssub.s32 %s20, 1
      %s26 = ssub.s32 %s20, 2
      %s27 = sadd.s32 %s20, 1
      %s28 = ssub.s32 %s20, %s27
      %p29 = scmp.eq.s32.totalorder %s28, 0
      %s31 = sadd.s32 %s30, 1
      %s32 = scalar_select %p29, %s30, %s31
      %p35 = pneg %p29
      %p36 = scmp.eq.s32.totalorder %s20, 1
      %p37 = por %p35, %p36
      %p38 = scmp.ne.s32.totalorder %s30, %s33
      %p39 = scmp.eq.s32.totalorder %s20, 0
      %p40 = por %p38, %p39
      %p41 = scmp.ne.s32.totalorder %s30, %s33
      %p42 = scmp.eq.s32.totalorder %s25, 1
      %p43 = por %p41, %p42
      %p44 = scmp.ne.s32.totalorder %s33, %s34
      %p45 = scmp.eq.s32.totalorder %s25, 0
      %p46 = por %p44, %p45
      %p47 = scmp.ne.s32.totalorder %s33, %s34
      %p48 = scmp.eq.s32.totalorder %s26, 1
      %p49 = por %p47, %p48
      %p51 = scmp.ne.s32.totalorder %s34, %s50
      %p52 = scmp.eq.s32.totalorder %s26, 0
      %p53 = por %p51, %p52
      %s55 = sadd.s32 %s54, 1
      %p58 = scmp.eq.s32.totalorder %s20, 1
      %p59 = scmp.ne.s32.totalorder %s54, %s56
      %p60 = scmp.eq.s32.totalorder %s20, 0
      %p61 = por %p59, %p60
      %p62 = scmp.ne.s32.totalorder %s54, %s56
      %p63 = scmp.eq.s32.totalorder %s25, 1
      %p64 = por %p62, %p63
      %p65 = scmp.ne.s32.totalorder %s56, %s57
      %p66 = scmp.eq.s32.totalorder %s25, 0
      %p67 = por %p65, %p66
      %p68 = scmp.ne.s32.totalorder %s56, %s57
      %p69 = scmp.eq.s32.totalorder %s26, 1
      %p70 = por %p68, %p69
      %p72 = scmp.ne.s32.totalorder %s57, %s71
      %p73 = scmp.eq.s32.totalorder %s26, 0
      %p74 = por %p72, %p73
      %s76 = sadd.s32 %s75, 1
      %p79 = scmp.eq.s32.totalorder %s20, 1
      %p80 = scmp.ne.s32.totalorder %s75, %s77
      %p81 = scmp.eq.s32.totalorder %s20, 0
      %p82 = por %p80, %p81
      %p83 = scmp.ne.s32.totalorder %s75, %s77
      %p84 = scmp.eq.s32.totalorder %s25, 1
      %p85 = por %p83, %p84
      %p86 = scmp.ne.s32.totalorder %s77, %s78
      %p87 = scmp.eq.s32.totalorder %s25, 0
      %p88 = por %p86, %p87
      %p89 = scmp.ne.s32.totalorder %s77, %s78
      %p90 = scmp.eq.s32.totalorder %s26, 1
      %p91 = por %p89, %p90
      %p93 = scmp.ne.s32.totalorder %s78, %s92
      %p94 = scmp.eq.s32.totalorder %s26, 0
      %p95 = por %p93, %p94
      %s97 = sadd.s32 %s96, 1
      %p100 = scmp.eq.s32.totalorder %s20, 1
      %p101 = scmp.ne.s32.totalorder %s96, %s98
      %p102 = scmp.eq.s32.totalorder %s20, 0
      %p103 = por %p101, %p102
      %p104 = scmp.ne.s32.totalorder %s96, %s98
      %p105 = scmp.eq.s32.totalorder %s25, 1
      %p106 = por %p104, %p105
      %p107 = scmp.ne.s32.totalorder %s98, %s99
      %p108 = scmp.eq.s32.totalorder %s25, 0
      %p109 = por %p107, %p108
      %p110 = scmp.ne.s32.totalorder %s98, %s99
      %p111 = scmp.eq.s32.totalorder %s26, 1
      %p112 = por %p110, %p111
      %p114 = scmp.ne.s32.totalorder %s99, %s113
      %p115 = scmp.eq.s32.totalorder %s26, 0
      %p116 = por %p114, %p115
      %s118 = sadd.s32 %s117, 1
      %p121 = scmp.eq.s32.totalorder %s20, 1
      %p122 = scmp.ne.s32.totalorder %s117, %s119
      %p123 = scmp.eq.s32.totalorder %s20, 0
      %p124 = por %p122, %p123
      %p125 = scmp.ne.s32.totalorder %s117, %s119
      %p126 = scmp.eq.s32.totalorder %s25, 1
      %p127 = por %p125, %p126
      %p128 = scmp.ne.s32.totalorder %s119, %s120
      %p129 = scmp.eq.s32.totalorder %s25, 0
      %p130 = por %p128, %p129
      %p131 = scmp.ne.s32.totalorder %s119, %s120
      %p132 = scmp.eq.s32.totalorder %s26, 1
      %p133 = por %p131, %p132
      %p135 = scmp.ne.s32.totalorder %s120, %s134
      %p136 = scmp.eq.s32.totalorder %s26, 0
      %p137 = por %p135, %p136
      %s139 = sadd.s32 %s138, 1
      %p142 = scmp.eq.s32.totalorder %s20, 1
      %p143 = scmp.ne.s32.totalorder %s138, %s140
      %p144 = scmp.eq.s32.totalorder %s20, 0
      %p145 = por %p143, %p144
      %p146 = scmp.ne.s32.totalorder %s138, %s140
      %p147 = scmp.eq.s32.totalorder %s25, 1
      %p148 = por %p146, %p147
      %p149 = scmp.ne.s32.totalorder %s140, %s141
      %p150 = scmp.eq.s32.totalorder %s25, 0
      %p151 = por %p149, %p150
      %p152 = scmp.ne.s32.totalorder %s140, %s141
      %p153 = scmp.eq.s32.totalorder %s26, 1
      %p154 = por %p152, %p153
      %p156 = scmp.ne.s32.totalorder %s141, %s155
      %p157 = scmp.eq.s32.totalorder %s26, 0
      %p158 = por %p156, %p157
      %s160 = sadd.s32 %s159, 1
      %p163 = scmp.eq.s32.totalorder %s20, 1
      %p164 = scmp.ne.s32.totalorder %s159, %s161
      %p165 = scmp.eq.s32.totalorder %s20, 0
      %p166 = por %p164, %p165
      %p167 = scmp.ne.s32.totalorder %s159, %s161
      %p168 = scmp.eq.s32.totalorder %s25, 1
      %p169 = por %p167, %p168
      %p170 = scmp.ne.s32.totalorder %s161, %s162
      %p171 = scmp.eq.s32.totalorder %s25, 0
      %p172 = por %p170, %p171
      %p173 = scmp.ne.s32.totalorder %s161, %s162
      %p174 = scmp.eq.s32.totalorder %s26, 1
      %p175 = por %p173, %p174
      %p177 = scmp.ne.s32.totalorder %s162, %s176
      %p178 = scmp.eq.s32.totalorder %s26, 0
      %p179 = por %p177, %p178
      %s180 = ssub.s32 %s20, %s27
      %p181 = scmp.eq.s32.totalorder %s180, 0
      %s183 = sadd.s32 %s182, 1
      %s184 = scalar_select %p181, %s182, %s183
      %p187 = pneg %p181
      %p188 = scmp.eq.s32.totalorder %s20, 1
      %p189 = por %p187, %p188
      %p190 = scmp.ne.s32.totalorder %s182, %s185
      %p191 = scmp.eq.s32.totalorder %s20, 0
      %p192 = por %p190, %p191
      %p193 = scmp.ne.s32.totalorder %s182, %s185
      %p194 = scmp.eq.s32.totalorder %s25, 1
      %p195 = por %p193, %p194
      %p196 = scmp.ne.s32.totalorder %s185, %s186
      %p197 = scmp.eq.s32.totalorder %s25, 0
      %p198 = por %p196, %p197
      %p199 = scmp.ne.s32.totalorder %s185, %s186
      %p200 = scmp.eq.s32.totalorder %s26, 1
      %p201 = por %p199, %p200
      %p203 = scmp.ne.s32.totalorder %s186, %s202
      %p204 = scmp.eq.s32.totalorder %s26, 0
      %p205 = por %p203, %p204
      %p206 = scmp.le.s32.totalorder 1, %s20
      %p207 = scmp.lt.s32.totalorder %s20, 3
      %p208 = pnand %p206, %p207
      %p209 = pneg %p208
      // Predicated region
      $region9: #{tpu_custom_call.1} parent=5 // pred_check
        _
      $region10: #{tpu_custom_call.1} parent=5 // pred_check_branch
        %211 = sbr.rel (%p208) target = $region12
      $region11: #{tpu_custom_call.1} parent=5 // pred_region
        %s212 = ssub.s32 %s20, 1
        // Predicated region
        $region13: #{tpu_custom_call.1} parent=11 // pred_check
          %p213 = pneg %p67
        $region14: #{tpu_custom_call.1} parent=11 // pred_check_branch
          %215 = sbr.rel (%p213) target = $region16
        $region15: #{tpu_custom_call.1} parent=11 // pred_region
          %217 = vsyncadd [#allocation7], 0
          %s218 = sshll.u32 %s1, 4
          %s219 = int_to_ptr.hbm [resolvable:$true] %s218
          %s220 = sshll.u32 [#allocation6], 4
          %s221 = int_to_ptr.vmem [resolvable:$true] %s220
          %226 = dma.hbm_to_vmem [thread:$0]  %s219, 3072, %s221, [#allocation7], 64, 64, 4
        $region16: #{tpu_custom_call.1} parent=11 // pred_fallthru
          _
        // Predicated region
        $region17: #{tpu_custom_call.1} parent=11 // pred_check
          %p227 = pneg %p88
        $region18: #{tpu_custom_call.1} parent=11 // pred_check_branch
          %229 = sbr.rel (%p227) target = $region20
        $region19: #{tpu_custom_call.1} parent=11 // pred_region
          %231 = vsyncadd [#allocation7], 0
          %s232 = sshll.u32 %s2, 4
          %s233 = int_to_ptr.hbm [resolvable:$true] %s232
          %s234 = sshll.u32 [#allocation8], 4
          %s235 = int_to_ptr.vmem [resolvable:$true] %s234
          %240 = dma.hbm_to_vmem [thread:$0]  %s233, 3072, %s235, [#allocation7], 64, 64, 4
        $region20: #{tpu_custom_call.1} parent=11 // pred_fallthru
          _
        // Predicated region
        $region21: #{tpu_custom_call.1} parent=11 // pred_check
          %p241 = pneg %p109
        $region22: #{tpu_custom_call.1} parent=11 // pred_check_branch
          %243 = sbr.rel (%p241) target = $region24
        $region23: #{tpu_custom_call.1} parent=11 // pred_region
          _
        $region24: #{tpu_custom_call.1} parent=11 // pred_fallthru
          _
        // Predicated region
        $region25: #{tpu_custom_call.1} parent=11 // pred_check
          %p244 = pneg %p130
        $region26: #{tpu_custom_call.1} parent=11 // pred_check_branch
          %246 = sbr.rel (%p244) target = $region28
        $region27: #{tpu_custom_call.1} parent=11 // pred_region
          _
        $region28: #{tpu_custom_call.1} parent=11 // pred_fallthru
          _
        // Predicated region
        $region29: #{tpu_custom_call.1} parent=11 // pred_check
          %p247 = pneg %p151
        $region30: #{tpu_custom_call.1} parent=11 // pred_check_branch
          %249 = sbr.rel (%p247) target = $region32
        $region31: #{tpu_custom_call.1} parent=11 // pred_region
          _
        $region32: #{tpu_custom_call.1} parent=11 // pred_fallthru
          _
        // Predicated region
        $region33: #{tpu_custom_call.1} parent=11 // pred_check
          %p250 = pneg %p172
        $region34: #{tpu_custom_call.1} parent=11 // pred_check_branch
          %252 = sbr.rel (%p250) target = $region36
        $region35: #{tpu_custom_call.1} parent=11 // pred_region
          _
        $region36: #{tpu_custom_call.1} parent=11 // pred_fallthru
          _
      $region12: #{tpu_custom_call.1} parent=5 // pred_fallthru
        _
      %p253 = scmp.lt.s32.totalorder %s20, 2
      // Predicated region
      $region37: #{tpu_custom_call.1} parent=5 // pred_check
        %p254 = pneg %p253
      $region38: #{tpu_custom_call.1} parent=5 // pred_check_branch
        %256 = sbr.rel (%p254) target = $region40
      $region39: #{tpu_custom_call.1} parent=5 // pred_region
        // Predicated region
        $region41: #{tpu_custom_call.1} parent=39 // pred_check
          %p257 = pneg %p40
        $region42: #{tpu_custom_call.1} parent=39 // pred_check_branch
          %259 = sbr.rel (%p257) target = $region44
        $region43: #{tpu_custom_call.1} parent=39 // pred_region
          %s260 = sand.u32 %s30, 1
          %s261 = scalar_lea.sflag [#allocation4], %s260
          %s262 = sand.u32 %s30, 1
          %s263 = smul.addr %s262, 16
          %s264 = scalar_lea.vmem [#allocation3], %s263
          %266 = vsyncadd %s261, 0
          %s267 = smul.addr %s20, 2
          %s268 = smul.addr %s267, 8
          %s269 = scalar_lea.hbm %s0, %s268
          %s270 = sshll.u32 %s269, 4
          %s271 = int_to_ptr.hbm [resolvable:$true] %s270
          %s272 = sshll.u32 %s264, 4
          %s273 = int_to_ptr.vmem [resolvable:$true] %s272
          %278 = dma.hbm_to_vmem [thread:$0]  %s271, 256, %s273, %s261, 128, 128, 8
        $region44: #{tpu_custom_call.1} parent=39 // pred_fallthru
          _
      $region40: #{tpu_custom_call.1} parent=5 // pred_fallthru
        _
      %p279 = scmp.le.s32.totalorder 1, %s20
      %p280 = scmp.lt.s32.totalorder %s20, 3
      %p281 = pnand %p279, %p280
      %p282 = pneg %p281
      // Predicated region
      $region45: #{tpu_custom_call.1} parent=5 // pred_check
        _
      $region46: #{tpu_custom_call.1} parent=5 // pred_check_branch
        %284 = sbr.rel (%p281) target = $region48
      $region47: #{tpu_custom_call.1} parent=5 // pred_region
        %s285 = ssub.s32 %s20, 1
        %s286 = sand.u32 %s33, 1
        %s287 = scalar_lea.sflag [#allocation4], %s286
        %s288 = sand.u32 %s33, 1
        %s289 = smul.addr %s288, 16
        %s290 = scalar_lea.vmem [#allocation3], %s289
        // Predicated region
        $region49: #{tpu_custom_call.1} parent=47 // pred_check
          %p291 = pneg %p46
        $region50: #{tpu_custom_call.1} parent=47 // pred_check_branch
          %293 = sbr.rel (%p291) target = $region52
        $region51: #{tpu_custom_call.1} parent=47 // pred_region
          %295 = dma.done %s287, 256
        $region52: #{tpu_custom_call.1} parent=47 // pred_fallthru
          _
        // Predicated region
        $region53: #{tpu_custom_call.1} parent=47 // pred_check
          %p296 = pneg %p67
        $region54: #{tpu_custom_call.1} parent=47 // pred_check_branch
          %298 = sbr.rel (%p296) target = $region56
        $region55: #{tpu_custom_call.1} parent=47 // pred_region
          %300 = dma.done [#allocation7], 3072
        $region56: #{tpu_custom_call.1} parent=47 // pred_fallthru
          _
        // Predicated region
        $region57: #{tpu_custom_call.1} parent=47 // pred_check
          %p301 = pneg %p88
        $region58: #{tpu_custom_call.1} parent=47 // pred_check_branch
          %303 = sbr.rel (%p301) target = $region60
        $region59: #{tpu_custom_call.1} parent=47 // pred_region
          %305 = dma.done [#allocation7], 3072
        $region60: #{tpu_custom_call.1} parent=47 // pred_fallthru
          _
        %s306 = sand.u32 %s33, 1
        %s307 = scalar_lea.sflag [#allocation4], %s306
        %s308 = sand.u32 %s33, 1
        %s309 = smul.addr %s308, 16
        %s310 = scalar_lea.vmem [#allocation3], %s309
        %p311 = pneg %p46
        %p312 = pneg %p43
        %p313 = pneg %p67
        %p314 = pneg %p64
        %p315 = pneg %p88
        %p316 = pneg %p85
        %p317 = pneg %p109
        %p318 = pneg %p106
        %p319 = pneg %p130
        %p320 = pneg %p127
        %p321 = pneg %p151
        %p322 = pneg %p148
        %p323 = pneg %p172
        %p324 = pneg %p169
        %p325 = pneg %p198
        %p326 = pneg %p195
        %s327 = sand.u32 %s185, 1
        %s328 = scalar_lea.sflag [#allocation5], %s327
        %s329 = sand.u32 %s185, 1
        %s330 = smul.addr %s329, 16
        %s331 = scalar_lea.vmem [#allocation9], %s330
        %332 = vst [vmem:[#allocation2] sm:$0x1] 0.0
        %333 = vst [vmem:[#allocation2 + $0x11] sm:$0x1] 0.0
        %v334 = vld [vmem:[%s290] sm:$0xff]
        %v335 = vld [vmem:[%s290 + $0x8] sm:$0xff]
        %336 = vst [vmem:[#allocation2 + $0x1] sm:$0xff] %v334
        %337 = vst [vmem:[#allocation2 + $0x9] sm:$0xff] %v335
        %v338 = vld [vmem:[#allocation2] sm:$0xff]
        %v339 = vld [vmem:[#allocation2 + $0x8] sm:$0xff]
        %v340 = vpack.c.bf16 %v339, %v338
        %v341 = vld [vmem:[#allocation6] sm:$0xf]
        %v342 = vld [vmem:[#allocation6 + $0x4] sm:$0xf]
        %v343 = vld [vmem:[#allocation6 + $0x8] sm:$0xf]
        %v344 = vld [vmem:[#allocation6 + $0xc] sm:$0xf]
        %v345 = vld [vmem:[#allocation6 + $0x10] sm:$0xf]
        %v346 = vld [vmem:[#allocation6 + $0x14] sm:$0xf]
        %v347 = vld [vmem:[#allocation6 + $0x18] sm:$0xf]
        %v348 = vld [vmem:[#allocation6 + $0x1c] sm:$0xf]
        %v349 = vld [vmem:[#allocation6 + $0x20] sm:$0xf]
        %v350 = vld [vmem:[#allocation6 + $0x24] sm:$0xf]
        %v351 = vld [vmem:[#allocation6 + $0x28] sm:$0xf]
        %v352 = vld [vmem:[#allocation6 + $0x2c] sm:$0xf]
        %v353 = vld [vmem:[#allocation6 + $0x30] sm:$0xf]
        %v354 = vld [vmem:[#allocation6 + $0x34] sm:$0xf]
        %v355 = vld [vmem:[#allocation6 + $0x38] sm:$0xf]
        %v356 = vld [vmem:[#allocation6 + $0x3c] sm:$0xf]
        %v357 = vld [vmem:[#allocation2 + $0x1] sm:$0xff]
        %v358 = vld [vmem:[#allocation2 + $0x9] sm:$0xff]
        %v359 = vpack.c.bf16 %v358, %v357
        %s360 = scalar_lea.vmem [#allocation6], 64
        %v361 = vld [vmem:[%s360] sm:$0xf]
        %v362 = vld [vmem:[%s360 + $0x4] sm:$0xf]
        %v363 = vld [vmem:[%s360 + $0x8] sm:$0xf]
        %v364 = vld [vmem:[%s360 + $0xc] sm:$0xf]
        %v365 = vld [vmem:[%s360 + $0x10] sm:$0xf]
        %v366 = vld [vmem:[%s360 + $0x14] sm:$0xf]
        %v367 = vld [vmem:[%s360 + $0x18] sm:$0xf]
        %v368 = vld [vmem:[%s360 + $0x1c] sm:$0xf]
        %v369 = vld [vmem:[%s360 + $0x20] sm:$0xf]
        %v370 = vld [vmem:[%s360 + $0x24] sm:$0xf]
        %v371 = vld [vmem:[%s360 + $0x28] sm:$0xf]
        %v372 = vld [vmem:[%s360 + $0x2c] sm:$0xf]
        %v373 = vld [vmem:[%s360 + $0x30] sm:$0xf]
        %v374 = vld [vmem:[%s360 + $0x34] sm:$0xf]
        %v375 = vld [vmem:[%s360 + $0x38] sm:$0xf]
        %v376 = vld [vmem:[%s360 + $0x3c] sm:$0xf]
        %v393 = vunpack.c.l.b16 %v361
        %v394 = vunpack.c.l.b16 %v362
        %v395 = vunpack.c.l.b16 %v363
        %v396 = vunpack.c.l.b16 %v364
        %v397 = vunpack.c.l.b16 %v365
        %v398 = vunpack.c.l.b16 %v366
        %v399 = vunpack.c.l.b16 %v367
        %v400 = vunpack.c.l.b16 %v368
        %v401 = vunpack.c.l.b16 %v369
        %v402 = vunpack.c.l.b16 %v370
        %v403 = vunpack.c.l.b16 %v371
        %v404 = vunpack.c.l.b16 %v372
        %v405 = vunpack.c.l.b16 %v373
        %v406 = vunpack.c.l.b16 %v374
        %v407 = vunpack.c.l.b16 %v375
        %v408 = vunpack.c.l.b16 %v376
        %v409 = vpack.c.b16 %v394, %v393
        %v410 = vpack.c.b16 %v396, %v395
        %v411 = vpack.c.b16 %v398, %v397
        %v412 = vpack.c.b16 %v400, %v399
        %v413 = vpack.c.b16 %v402, %v401
        %v414 = vpack.c.b16 %v404, %v403
        %v415 = vpack.c.b16 %v406, %v405
        %v416 = vpack.c.b16 %v408, %v407
        %425 = vmatpush.bf16.msra.mxu0 %v416
        %426 = vmatpush.bf16.msra.mxu0 %v415
        %427 = vmatpush.bf16.msra.mxu0 %v414
        %428 = vmatpush.bf16.msra.mxu0 %v413
        %429 = vmatpush.bf16.msra.mxu0 %v412
        %430 = vmatpush.bf16.msra.mxu0 %v411
        %431 = vmatpush.bf16.msra.mxu0 %v410
        %432 = vmatpush.bf16.msra.mxu0 %v409
        %433 = vmatmul.bf16.gmra.mxu0 %v359
        %v434 = vpop.f32.mrf.mxu0
        %v435 = vadd.f32 0.0, %v434
        %v436 = vpop.f32.mrf.mxu0
        %v437 = vadd.f32 0.0, %v436
        %438 = vdwg.mxu0
        %v455 = vunpack.c.l.b16 %v341
        %v456 = vunpack.c.l.b16 %v342
        %v457 = vunpack.c.l.b16 %v343
        %v458 = vunpack.c.l.b16 %v344
        %v459 = vunpack.c.l.b16 %v345
        %v460 = vunpack.c.l.b16 %v346
        %v461 = vunpack.c.l.b16 %v347
        %v462 = vunpack.c.l.b16 %v348
        %v463 = vunpack.c.l.b16 %v349
        %v464 = vunpack.c.l.b16 %v350
        %v465 = vunpack.c.l.b16 %v351
        %v466 = vunpack.c.l.b16 %v352
        %v467 = vunpack.c.l.b16 %v353
        %v468 = vunpack.c.l.b16 %v354
        %v469 = vunpack.c.l.b16 %v355
        %v470 = vunpack.c.l.b16 %v356
        %v471 = vpack.c.b16 %v456, %v455
        %v472 = vpack.c.b16 %v458, %v457
        %v473 = vpack.c.b16 %v460, %v459
        %v474 = vpack.c.b16 %v462, %v461
        %v475 = vpack.c.b16 %v464, %v463
        %v476 = vpack.c.b16 %v466, %v465
        %v477 = vpack.c.b16 %v468, %v467
        %v478 = vpack.c.b16 %v470, %v469
        %487 = vmatpush.bf16.msra.mxu0 %v478
        %488 = vmatpush.bf16.msra.mxu0 %v477
        %489 = vmatpush.bf16.msra.mxu0 %v476
        %490 = vmatpush.bf16.msra.mxu0 %v475
        %491 = vmatpush.bf16.msra.mxu0 %v474
        %492 = vmatpush.bf16.msra.mxu0 %v473
        %493 = vmatpush.bf16.msra.mxu0 %v472
        %494 = vmatpush.bf16.msra.mxu0 %v471
        %495 = vmatmul.bf16.gmra.mxu0 %v340
        %v496 = vpop.f32.mrf.mxu0
        %v497 = vadd.f32 %v435, %v496
        %v498 = vpop.f32.mrf.mxu0
        %v499 = vadd.f32 %v437, %v498
        %500 = vdwg.mxu0
        %v501 = vld [vmem:[#allocation2 + $0x2] sm:$0xff]
        %v502 = vld [vmem:[#allocation2 + $0xa] sm:$0xff]
        %v503 = vpack.c.bf16 %v502, %v501
        %s504 = scalar_lea.vmem [#allocation6], 128
        %v505 = vld [vmem:[%s504] sm:$0xf]
        %v506 = vld [vmem:[%s504 + $0x4] sm:$0xf]
        %v507 = vld [vmem:[%s504 + $0x8] sm:$0xf]
        %v508 = vld [vmem:[%s504 + $0xc] sm:$0xf]
        %v509 = vld [vmem:[%s504 + $0x10] sm:$0xf]
        %v510 = vld [vmem:[%s504 + $0x14] sm:$0xf]
        %v511 = vld [vmem:[%s504 + $0x18] sm:$0xf]
        %v512 = vld [vmem:[%s504 + $0x1c] sm:$0xf]
        %v513 = vld [vmem:[%s504 + $0x20] sm:$0xf]
        %v514 = vld [vmem:[%s504 + $0x24] sm:$0xf]
        %v515 = vld [vmem:[%s504 + $0x28] sm:$0xf]
        %v516 = vld [vmem:[%s504 + $0x2c] sm:$0xf]
        %v517 = vld [vmem:[%s504 + $0x30] sm:$0xf]
        %v518 = vld [vmem:[%s504 + $0x34] sm:$0xf]
        %v519 = vld [vmem:[%s504 + $0x38] sm:$0xf]
        %v520 = vld [vmem:[%s504 + $0x3c] sm:$0xf]
        %v537 = vunpack.c.l.b16 %v505
        %v538 = vunpack.c.l.b16 %v506
        %v539 = vunpack.c.l.b16 %v507
        %v540 = vunpack.c.l.b16 %v508
        %v541 = vunpack.c.l.b16 %v509
        %v542 = vunpack.c.l.b16 %v510
        %v543 = vunpack.c.l.b16 %v511
        %v544 = vunpack.c.l.b16 %v512
        %v545 = vunpack.c.l.b16 %v513
        %v546 = vunpack.c.l.b16 %v514
        %v547 = vunpack.c.l.b16 %v515
        %v548 = vunpack.c.l.b16 %v516
        %v549 = vunpack.c.l.b16 %v517
        %v550 = vunpack.c.l.b16 %v518
        %v551 = vunpack.c.l.b16 %v519
        %v552 = vunpack.c.l.b16 %v520
        %v553 = vpack.c.b16 %v538, %v537
        %v554 = vpack.c.b16 %v540, %v539
        %v555 = vpack.c.b16 %v542, %v541
        %v556 = vpack.c.b16 %v544, %v543
        %v557 = vpack.c.b16 %v546, %v545
        %v558 = vpack.c.b16 %v548, %v547
        %v559 = vpack.c.b16 %v550, %v549
        %v560 = vpack.c.b16 %v552, %v551
        %569 = vmatpush.bf16.msra.mxu0 %v560
        %570 = vmatpush.bf16.msra.mxu0 %v559
        %571 = vmatpush.bf16.msra.mxu0 %v558
        %572 = vmatpush.bf16.msra.mxu0 %v557
        %573 = vmatpush.bf16.msra.mxu0 %v556
        %574 = vmatpush.bf16.msra.mxu0 %v555
        %575 = vmatpush.bf16.msra.mxu0 %v554
        %576 = vmatpush.bf16.msra.mxu0 %v553
        %577 = vmatmul.bf16.gmra.mxu0 %v503
        %v578 = vpop.f32.mrf.mxu0
        %v579 = vadd.f32 0.0, %v578
        %v580 = vpop.f32.mrf.mxu0
        %v581 = vadd.f32 0.0, %v580
        %582 = vdwg.mxu0
        %v583 = vadd.f32 %v497, %v579
        %v584 = vadd.f32 %v499, %v581
        %v585 = vld [vmem:[%s3] sm:$0x1]
        %v587 = vperm.slane %v585, 0
        %v589 = vmul.f32 %v583, %v587
        %v590 = vmul.f32 %v584, %v587
        %v591 = vld [vmem:[%s4] sm:$0x1]
        %v593 = vperm.slane %v591, 0
        %v595 = vadd.f32 %v589, %v593
        %v596 = vadd.f32 %v590, %v593
        %v597 = vmax.f32 %v595, 0.0
        %v598 = vmax.f32 %v596, 0.0
        %599 = vst [vmem:[#allocation2 + $0x1] sm:$0xff] %v597
        %600 = vst [vmem:[#allocation2 + $0x9] sm:$0xff] %v598
        %v601 = vld [vmem:[#allocation2] sm:$0xff]
        %v602 = vld [vmem:[#allocation2 + $0x8] sm:$0xff]
        %v603 = vpack.c.bf16 %v602, %v601
        %v604 = vld [vmem:[#allocation8] sm:$0xf]
        %v605 = vld [vmem:[#allocation8 + $0x4] sm:$0xf]
        %v606 = vld [vmem:[#allocation8 + $0x8] sm:$0xf]
        %v607 = vld [vmem:[#allocation8 + $0xc] sm:$0xf]
        %v608 = vld [vmem:[#allocation8 + $0x10] sm:$0xf]
        %v609 = vld [vmem:[#allocation8 + $0x14] sm:$0xf]
        %v610 = vld [vmem:[#allocation8 + $0x18] sm:$0xf]
        %v611 = vld [vmem:[#allocation8 + $0x1c] sm:$0xf]
        %v612 = vld [vmem:[#allocation8 + $0x20] sm:$0xf]
        %v613 = vld [vmem:[#allocation8 + $0x24] sm:$0xf]
        %v614 = vld [vmem:[#allocation8 + $0x28] sm:$0xf]
        %v615 = vld [vmem:[#allocation8 + $0x2c] sm:$0xf]
        %v616 = vld [vmem:[#allocation8 + $0x30] sm:$0xf]
        %v617 = vld [vmem:[#allocation8 + $0x34] sm:$0xf]
        %v618 = vld [vmem:[#allocation8 + $0x38] sm:$0xf]
        %v619 = vld [vmem:[#allocation8 + $0x3c] sm:$0xf]
        %v620 = vld [vmem:[#allocation2 + $0x1] sm:$0xff]
        %v621 = vld [vmem:[#allocation2 + $0x9] sm:$0xff]
        %v622 = vpack.c.bf16 %v621, %v620
        %s623 = scalar_lea.vmem [#allocation8], 64
        %v624 = vld [vmem:[%s623] sm:$0xf]
        %v625 = vld [vmem:[%s623 + $0x4] sm:$0xf]
        %v626 = vld [vmem:[%s623 + $0x8] sm:$0xf]
        %v627 = vld [vmem:[%s623 + $0xc] sm:$0xf]
        %v628 = vld [vmem:[%s623 + $0x10] sm:$0xf]
        %v629 = vld [vmem:[%s623 + $0x14] sm:$0xf]
        %v630 = vld [vmem:[%s623 + $0x18] sm:$0xf]
        %v631 = vld [vmem:[%s623 + $0x1c] sm:$0xf]
        %v632 = vld [vmem:[%s623 + $0x20] sm:$0xf]
        %v633 = vld [vmem:[%s623 + $0x24] sm:$0xf]
        %v634 = vld [vmem:[%s623 + $0x28] sm:$0xf]
        %v635 = vld [vmem:[%s623 + $0x2c] sm:$0xf]
        %v636 = vld [vmem:[%s623 + $0x30] sm:$0xf]
        %v637 = vld [vmem:[%s623 + $0x34] sm:$0xf]
        %v638 = vld [vmem:[%s623 + $0x38] sm:$0xf]
        %v639 = vld [vmem:[%s623 + $0x3c] sm:$0xf]
        %v656 = vunpack.c.l.b16 %v624
        %v657 = vunpack.c.l.b16 %v625
        %v658 = vunpack.c.l.b16 %v626
        %v659 = vunpack.c.l.b16 %v627
        %v660 = vunpack.c.l.b16 %v628
        %v661 = vunpack.c.l.b16 %v629
        %v662 = vunpack.c.l.b16 %v630
        %v663 = vunpack.c.l.b16 %v631
        %v664 = vunpack.c.l.b16 %v632
        %v665 = vunpack.c.l.b16 %v633
        %v666 = vunpack.c.l.b16 %v634
        %v667 = vunpack.c.l.b16 %v635
        %v668 = vunpack.c.l.b16 %v636
        %v669 = vunpack.c.l.b16 %v637
        %v670 = vunpack.c.l.b16 %v638
        %v671 = vunpack.c.l.b16 %v639
        %v672 = vpack.c.b16 %v657, %v656
        %v673 = vpack.c.b16 %v659, %v658
        %v674 = vpack.c.b16 %v661, %v660
        %v675 = vpack.c.b16 %v663, %v662
        %v676 = vpack.c.b16 %v665, %v664
        %v677 = vpack.c.b16 %v667, %v666
        %v678 = vpack.c.b16 %v669, %v668
        %v679 = vpack.c.b16 %v671, %v670
        %688 = vmatpush.bf16.msra.mxu0 %v679
        %689 = vmatpush.bf16.msra.mxu0 %v678
        %690 = vmatpush.bf16.msra.mxu0 %v677
        %691 = vmatpush.bf16.msra.mxu0 %v676
        %692 = vmatpush.bf16.msra.mxu0 %v675
        %693 = vmatpush.bf16.msra.mxu0 %v674
        %694 = vmatpush.bf16.msra.mxu0 %v673
        %695 = vmatpush.bf16.msra.mxu0 %v672
        %696 = vmatmul.bf16.gmra.mxu0 %v622
        %v697 = vpop.f32.mrf.mxu0
        %v698 = vadd.f32 0.0, %v697
        %v699 = vpop.f32.mrf.mxu0
        %v700 = vadd.f32 0.0, %v699
        %701 = vdwg.mxu0
        %v718 = vunpack.c.l.b16 %v604
        %v719 = vunpack.c.l.b16 %v605
        %v720 = vunpack.c.l.b16 %v606
        %v721 = vunpack.c.l.b16 %v607
        %v722 = vunpack.c.l.b16 %v608
        %v723 = vunpack.c.l.b16 %v609
        %v724 = vunpack.c.l.b16 %v610
        %v725 = vunpack.c.l.b16 %v611
        %v726 = vunpack.c.l.b16 %v612
        %v727 = vunpack.c.l.b16 %v613
        %v728 = vunpack.c.l.b16 %v614
        %v729 = vunpack.c.l.b16 %v615
        %v730 = vunpack.c.l.b16 %v616
        %v731 = vunpack.c.l.b16 %v617
        %v732 = vunpack.c.l.b16 %v618
        %v733 = vunpack.c.l.b16 %v619
        %v734 = vpack.c.b16 %v719, %v718
        %v735 = vpack.c.b16 %v721, %v720
        %v736 = vpack.c.b16 %v723, %v722
        %v737 = vpack.c.b16 %v725, %v724
        %v738 = vpack.c.b16 %v727, %v726
        %v739 = vpack.c.b16 %v729, %v728
        %v740 = vpack.c.b16 %v731, %v730
        %v741 = vpack.c.b16 %v733, %v732
        %750 = vmatpush.bf16.msra.mxu0 %v741
        %751 = vmatpush.bf16.msra.mxu0 %v740
        %752 = vmatpush.bf16.msra.mxu0 %v739
        %753 = vmatpush.bf16.msra.mxu0 %v738
        %754 = vmatpush.bf16.msra.mxu0 %v737
        %755 = vmatpush.bf16.msra.mxu0 %v736
        %756 = vmatpush.bf16.msra.mxu0 %v735
        %757 = vmatpush.bf16.msra.mxu0 %v734
        %758 = vmatmul.bf16.gmra.mxu0 %v603
        %v759 = vpop.f32.mrf.mxu0
        %v760 = vadd.f32 %v698, %v759
        %v761 = vpop.f32.mrf.mxu0
        %v762 = vadd.f32 %v700, %v761
        %763 = vdwg.mxu0
        %v764 = vld [vmem:[#allocation2 + $0x2] sm:$0xff]
        %v765 = vld [vmem:[#allocation2 + $0xa] sm:$0xff]
        %v766 = vpack.c.bf16 %v765, %v764
        %s767 = scalar_lea.vmem [#allocation8], 128
        %v768 = vld [vmem:[%s767] sm:$0xf]
        %v769 = vld [vmem:[%s767 + $0x4] sm:$0xf]
        %v770 = vld [vmem:[%s767 + $0x8] sm:$0xf]
        %v771 = vld [vmem:[%s767 + $0xc] sm:$0xf]
        %v772 = vld [vmem:[%s767 + $0x10] sm:$0xf]
        %v773 = vld [vmem:[%s767 + $0x14] sm:$0xf]
        %v774 = vld [vmem:[%s767 + $0x18] sm:$0xf]
        %v775 = vld [vmem:[%s767 + $0x1c] sm:$0xf]
        %v776 = vld [vmem:[%s767 + $0x20] sm:$0xf]
        %v777 = vld [vmem:[%s767 + $0x24] sm:$0xf]
        %v778 = vld [vmem:[%s767 + $0x28] sm:$0xf]
        %v779 = vld [vmem:[%s767 + $0x2c] sm:$0xf]
        %v780 = vld [vmem:[%s767 + $0x30] sm:$0xf]
        %v781 = vld [vmem:[%s767 + $0x34] sm:$0xf]
        %v782 = vld [vmem:[%s767 + $0x38] sm:$0xf]
        %v783 = vld [vmem:[%s767 + $0x3c] sm:$0xf]
        %v800 = vunpack.c.l.b16 %v768
        %v801 = vunpack.c.l.b16 %v769
        %v802 = vunpack.c.l.b16 %v770
        %v803 = vunpack.c.l.b16 %v771
        %v804 = vunpack.c.l.b16 %v772
        %v805 = vunpack.c.l.b16 %v773
        %v806 = vunpack.c.l.b16 %v774
        %v807 = vunpack.c.l.b16 %v775
        %v808 = vunpack.c.l.b16 %v776
        %v809 = vunpack.c.l.b16 %v777
        %v810 = vunpack.c.l.b16 %v778
        %v811 = vunpack.c.l.b16 %v779
        %v812 = vunpack.c.l.b16 %v780
        %v813 = vunpack.c.l.b16 %v781
        %v814 = vunpack.c.l.b16 %v782
        %v815 = vunpack.c.l.b16 %v783
        %v816 = vpack.c.b16 %v801, %v800
        %v817 = vpack.c.b16 %v803, %v802
        %v818 = vpack.c.b16 %v805, %v804
        %v819 = vpack.c.b16 %v807, %v806
        %v820 = vpack.c.b16 %v809, %v808
        %v821 = vpack.c.b16 %v811, %v810
        %v822 = vpack.c.b16 %v813, %v812
        %v823 = vpack.c.b16 %v815, %v814
        %832 = vmatpush.bf16.msra.mxu0 %v823
        %833 = vmatpush.bf16.msra.mxu0 %v822
        %834 = vmatpush.bf16.msra.mxu0 %v821
        %835 = vmatpush.bf16.msra.mxu0 %v820
        %836 = vmatpush.bf16.msra.mxu0 %v819
        %837 = vmatpush.bf16.msra.mxu0 %v818
        %838 = vmatpush.bf16.msra.mxu0 %v817
        %839 = vmatpush.bf16.msra.mxu0 %v816
        %840 = vmatmul.bf16.gmra.mxu0 %v766
        %v841 = vpop.f32.mrf.mxu0
        %v842 = vadd.f32 0.0, %v841
        %v843 = vpop.f32.mrf.mxu0
        %v844 = vadd.f32 0.0, %v843
        %845 = vdwg.mxu0
        %v846 = vadd.f32 %v760, %v842
        %v847 = vadd.f32 %v762, %v844
        %v848 = vld [vmem:[%s5] sm:$0x1]
        %v850 = vperm.slane %v848, 0
        %v852 = vmul.f32 %v846, %v850
        %v853 = vmul.f32 %v847, %v850
        %v854 = vld [vmem:[%s6] sm:$0x1]
        %v856 = vperm.slane %v854, 0
        %v858 = vadd.f32 %v852, %v856
        %v859 = vadd.f32 %v853, %v856
        %v860 = vadd.f32 %v858, %v334
        %v861 = vadd.f32 %v859, %v335
        %v862 = vmax.f32 %v860, 0.0
        %v863 = vmax.f32 %v861, 0.0
        %864 = vst [vmem:[%s331] sm:$0xff] %v862
        %865 = vst [vmem:[%s331 + $0x8] sm:$0xff] %v863
        %s866 = sand.u32 %s185, 1
        %s867 = scalar_lea.sflag [#allocation5], %s866
        %s868 = sand.u32 %s185, 1
        %s869 = smul.addr %s868, 16
        %s870 = scalar_lea.vmem [#allocation9], %s869
        // Predicated region
        $region61: #{tpu_custom_call.1} parent=47 // pred_check
          %p871 = pneg %p195
        $region62: #{tpu_custom_call.1} parent=47 // pred_check_branch
          %873 = sbr.rel (%p871) target = $region64
        $region63: #{tpu_custom_call.1} parent=47 // pred_region
          %875 = vsyncadd %s867, 0
          %s876 = smul.addr %s25, 2
          %s877 = smul.addr %s876, 8
          %s878 = scalar_lea.hbm %s7, %s877
          %s879 = sshll.u32 %s870, 4
          %s880 = int_to_ptr.vmem [resolvable:$true] %s879
          %s881 = sshll.u32 %s878, 4
          %s882 = int_to_ptr.hbm [resolvable:$true] %s881
          %887 = dma.vmem_to_hbm [thread:$0]  %s880, 256, %s882, %s867, 128, 128, 8
        $region64: #{tpu_custom_call.1} parent=47 // pred_fallthru
          _
      $region48: #{tpu_custom_call.1} parent=5 // pred_fallthru
        _
      %p888 = scmp.le.s32.totalorder 2, %s20
      // Predicated region
      $region65: #{tpu_custom_call.1} parent=5 // pred_check
        %p889 = pneg %p888
      $region66: #{tpu_custom_call.1} parent=5 // pred_check_branch
        %891 = sbr.rel (%p889) target = $region68
      $region67: #{tpu_custom_call.1} parent=5 // pred_region
        %s892 = ssub.s32 %s20, 2
        // Predicated region
        $region69: #{tpu_custom_call.1} parent=67 // pred_check
          %p893 = pneg %p201
        $region70: #{tpu_custom_call.1} parent=67 // pred_check_branch
          %895 = sbr.rel (%p893) target = $region72
        $region71: #{tpu_custom_call.1} parent=67 // pred_region
          %s896 = sand.u32 %s186, 1
          %s897 = scalar_lea.sflag [#allocation5], %s896
          %s898 = sand.u32 %s186, 1
          %s899 = smul.addr %s898, 16
          %s900 = scalar_lea.vmem [#allocation9], %s899
          %902 = dma.done %s897, 256
        $region72: #{tpu_custom_call.1} parent=67 // pred_fallthru
          _
      $region68: #{tpu_custom_call.1} parent=5 // pred_fallthru
        _
    $region6: #{tpu_custom_call.1} parent=1 // loop_footer
      %s24 = sadd.s32 1, %s20
    $region7: #{tpu_custom_call.1} parent=1 // loop_footer_branch
      %19 = sbr.rel target = $region3
    $region8: #{tpu_custom_call.1} parent=1 // loop_exit
      _
    %903 = vsyncpa [#allocation4], 1
    %s904 = scalar_lea.sflag [#allocation4], 1
    %905 = vsyncpa %s904, 1
    %906 = vsyncpa [#allocation7], 1
    %907 = vsyncpa [#allocation5], 1
    %s908 = scalar_lea.sflag [#allocation5], 1
    %909 = vsyncpa %s908, 1

</llo_original>
